<compile_context>
chip_gen: v5e
topology: v5e:2x2
jax: 0.10.0
libtpu: 0.0.40
codegen_flags: <defaults>
</compile_context>

<pallas_src>
import functools

import jax
import jax.numpy as jnp
from jax.experimental import pallas as pl
from jax.experimental.pallas import tpu as pltpu


# (in_features, out_features) per layer, matching the torch module.
_LAYER_DIMS = ((6, 32), (32, 64), (64, 32), (32, 16), (16, 3))
_ROW_PAD = 16  # row-block alignment inside the packed weight slab (bf16-friendly)
_SLAB_LANES = 128


def _round_up(n, m):
    return ((n + m - 1) // m) * m


def _layer_offsets():
    offs, off = [], 0
    for _, dout in _LAYER_DIMS:
        offs.append(off)
        off += _round_up(dout, _ROW_PAD)
    return tuple(offs), off


_ROW_OFFSETS, _TOTAL_ROWS = _layer_offsets()  # offsets (0,32,96,128,144), 160 rows


def _mlp_kernel(xT_ref, w_ref, b_ref, o_ref):
    """Full forward pass on one (features, TILE_B) batch tile, entirely in VMEM.

    xT_ref : (6, TILE_B)          activations, batch on lanes (compute dtype)
    w_ref  : (_TOTAL_ROWS, 128)   packed weights, layer l at rows
                                  [_ROW_OFFSETS[l] : +dout], cols [0:din]
    b_ref  : (_TOTAL_ROWS, 1)     packed biases (f32)
    o_ref  : (3, TILE_B)          logits, batch on lanes (f32)
    """
    n_layers = len(_LAYER_DIMS)
    h = xT_ref[...]  # (6, TILE_B) in compute dtype
    for l, (din, dout) in enumerate(_LAYER_DIMS):
        off = _ROW_OFFSETS[l]
        w = w_ref[off:off + dout, 0:din]          # (dout, din), static slice
        b = b_ref[off:off + dout, :]              # (dout, 1), f32
        # h = W @ h + b ; batch stays on the lane axis, f32 accumulation on MXU.
        h = jnp.dot(w, h, preferred_element_type=jnp.float32) + b
        if l < n_layers - 1:
            h = jnp.maximum(h, 0.0).astype(w_ref.dtype)  # ReLU in f32, cast for next dot
    o_ref[...] = h.astype(o_ref.dtype)


def pack_params(params, compute_dtype=jnp.float32):
    """Pack torch-convention params (W:(out,in), b:(out,)) into padded VMEM slabs."""
    w_slab = jnp.zeros((_TOTAL_ROWS, _SLAB_LANES), compute_dtype)
    b_slab = jnp.zeros((_TOTAL_ROWS, 1), jnp.float32)
    for (w, b), off, (din, dout) in zip(params, _ROW_OFFSETS, _LAYER_DIMS):
        assert w.shape == (dout, din) and b.shape == (dout,)
        w_slab = w_slab.at[off:off + dout, :din].set(w.astype(compute_dtype))
        b_slab = b_slab.at[off:off + dout, 0].set(b.astype(jnp.float32))
    return w_slab, b_slab


@functools.partial(jax.jit, static_argnames=("tile_b", "compute_dtype"))
def simple_dnn_forward(x, params, *, tile_b=1024, compute_dtype=jnp.float32):
    """x: (B, 6) float32; params: list of (W:(out,in), b:(out,)) torch-style.

    Returns (B, 3) float32 logits, identical math to SimpleDNN.forward.
    """
    assert x.ndim == 2 and x.shape[1] == _LAYER_DIMS[0][0]
    assert tile_b % 128 == 0, "tile must keep the lane axis dense"
    b_total = x.shape[0]
    d_in = _LAYER_DIMS[0][0]
    d_out = _LAYER_DIMS[-1][1]

    # Pick a lane-dense batch tile; pad B up to a multiple of it (zeros, sliced off).
    tb = min(tile_b, _round_up(max(b_total, 1), 128))
    b_pad = _round_up(b_total, tb)
    grid = (b_pad // tb,)

    # Batch-on-lanes: transpose once in the wrapper, pad the tail tile with zeros.
    xT = jnp.pad(x.T.astype(compute_dtype), ((0, 0), (0, b_pad - b_total)))
    w_slab, b_slab = pack_params(params, compute_dtype)

    out_T = pl.pallas_call(
        _mlp_kernel,
        out_shape=jax.ShapeDtypeStruct((d_out, b_pad), jnp.float32),
        grid=grid,
        in_specs=[
            pl.BlockSpec((d_in, tb), lambda i: (0, i)),                 # x tile (pipelined)
            pl.BlockSpec((_TOTAL_ROWS, _SLAB_LANES), lambda i: (0, 0)),  # weights, resident
            pl.BlockSpec((_TOTAL_ROWS, 1), lambda i: (0, 0)),            # biases, resident
        ],
        out_specs=pl.BlockSpec((d_out, tb), lambda i: (0, i)),          # lane-dense output
        compiler_params=pltpu.CompilerParams(
            dimension_semantics=("parallel",),  # shard batch tiles across TCs on v7x
        ),
    )(xT, w_slab, b_slab)

    return out_T[:, :b_total].T  # back to (B, 3), f32


def init_params(key):
    """Torch-convention init: W (out,in), b (out,), U(-1/sqrt(in), 1/sqrt(in))."""
    params = []
    for din, dout in _LAYER_DIMS:
        key, kw, kb = jax.random.split(key, 3)
        bound = float(din) ** -0.5
        w = jax.random.uniform(kw, (dout, din), jnp.float32, -bound, bound)
        b = jax.random.uniform(kb, (dout,), jnp.float32, -bound, bound)
        params.append((w, b))
    return params


def reference_forward(x, params):
    h = x
    for l, (w, b) in enumerate(params):
        h = h @ w.T + b
        if l < len(params) - 1:
            h = jnp.maximum(h, 0.0)
    return h


if __name__ == "__main__":
    key = jax.random.PRNGKey(0)
    kx, kp = jax.random.split(key)

    batch = 8
    x = jax.random.normal(kx, (batch, 6), jnp.float32)
    params = init_params(kp)
    ref = reference_forward(x, params)

    # f32 path (exact semantics of the torch module).
    out = jax.block_until_ready(simple_dnn_forward(x, params))
    assert out.shape == (batch, 3)
    assert jnp.allclose(out, ref, atol=1e-4, rtol=1e-4)

    # bf16 compute path (v6e/v7x HBM-bandwidth optimization), f32 accumulation.
    out_bf16 = jax.block_until_ready(
        simple_dnn_forward(x, params, compute_dtype=jnp.bfloat16))
    assert out_bf16.shape == (batch, 3)
    assert jnp.allclose(out_bf16, ref, atol=1e-1, rtol=5e-2)

    # Multi-step grid + ragged batch tail (exercises pipelining & padding path).
    batch2 = 300
    x2 = jax.random.normal(jax.random.PRNGKey(1), (batch2, 6), jnp.float32)
    out2 = jax.block_until_ready(simple_dnn_forward(x2, params, tile_b=128))
    ref2 = reference_forward(x2, params)
    assert out2.shape == (batch2, 3)
    assert jnp.allclose(out2, ref2, atol=1e-4, rtol=1e-4)

    # NOTE: at tiny batches a fused XLA dot chain is as fast; this kernel pays
    # off at large B where DMA pipelining and lane-dense layout matter.
    print("KERNEL_OK")
</pallas_src>

<mosaic_0001>
module attributes {stable_mosaic.version = 11 : i64} {
  func.func @_mlp_kernel(%arg0: i32, %arg1: memref<6x128xf32, #tpu.memory_space<vmem>>, %arg2: memref<160x128xf32, #tpu.memory_space<vmem>>, %arg3: memref<160x1xf32, #tpu.memory_space<vmem>>, %arg4: memref<3x128xf32, #tpu.memory_space<vmem>>) attributes {dimension_semantics = [#tpu.dimension_semantics<parallel>], iteration_bounds = array<i64: 1>, scalar_prefetch = 0 : i64, scratch_operands = 0 : i64, tpu.core_type = #tpu.core_type<tc>, window_params = [{transform_indices = @transform_0, window_bounds = array<i64: 6, 128>}, {pipeline_mode = #tpu.pipeline_mode<synchronous>, transform_indices = @transform_1, window_bounds = array<i64: 160, 128>}, {pipeline_mode = #tpu.pipeline_mode<synchronous>, transform_indices = @transform_2, window_bounds = array<i64: 160, 1>}, {transform_indices = @transform_3, window_bounds = array<i64: 3, 128>}]} {
    %c0 = arith.constant 0 : index
    %c0_0 = arith.constant 0 : index
    %0 = vector.load %arg1[%c0, %c0_0] : memref<6x128xf32, #tpu.memory_space<vmem>>, vector<6x128xf32>
    %c0_1 = arith.constant 0 : index
    %c0_2 = arith.constant 0 : index
    %1 = vector.load %arg2[%c0_1, %c0_2] : memref<160x128xf32, #tpu.memory_space<vmem>>, vector<32x6xf32>
    %c0_3 = arith.constant 0 : index
    %c0_4 = arith.constant 0 : index
    %2 = vector.load %arg3[%c0_3, %c0_4] : memref<160x1xf32, #tpu.memory_space<vmem>>, vector<32x1xf32>
    %cst = arith.constant dense<0.000000e+00> : vector<32x128xf32>
    %3 = tpu.matmul %1, %0, %cst {dimension_numbers = #tpu.dot_dimension_numbers<[1], [0], [0], [1], [0, 0, 1, 1], [], []>} : vector<32x6xf32>, vector<6x128xf32>, vector<32x128xf32> -> vector<32x128xf32>
    %4 = vector.broadcast %2 : vector<32x1xf32> to vector<32x128xf32>
    %5 = arith.addf %3, %4 : vector<32x128xf32>
    %cst_5 = arith.constant 0.000000e+00 : f32
    %6 = vector.broadcast %cst_5 : f32 to vector<32x128xf32>
    %7 = arith.maximumf %5, %6 : vector<32x128xf32>
    %c32 = arith.constant 32 : index
    %c0_6 = arith.constant 0 : index
    %8 = vector.load %arg2[%c32, %c0_6] : memref<160x128xf32, #tpu.memory_space<vmem>>, vector<64x32xf32>
    %c32_7 = arith.constant 32 : index
    %c0_8 = arith.constant 0 : index
    %9 = vector.load %arg3[%c32_7, %c0_8] : memref<160x1xf32, #tpu.memory_space<vmem>>, vector<64x1xf32>
    %cst_9 = arith.constant dense<0.000000e+00> : vector<64x128xf32>
    %10 = tpu.matmul %8, %7, %cst_9 {dimension_numbers = #tpu.dot_dimension_numbers<[1], [0], [0], [1], [0, 0, 1, 1], [], []>} : vector<64x32xf32>, vector<32x128xf32>, vector<64x128xf32> -> vector<64x128xf32>
    %11 = vector.broadcast %9 : vector<64x1xf32> to vector<64x128xf32>
    %12 = arith.addf %10, %11 : vector<64x128xf32>
    %cst_10 = arith.constant 0.000000e+00 : f32
    %13 = vector.broadcast %cst_10 : f32 to vector<64x128xf32>
    %14 = arith.maximumf %12, %13 : vector<64x128xf32>
    %c96 = arith.constant 96 : index
    %c0_11 = arith.constant 0 : index
    %15 = vector.load %arg2[%c96, %c0_11] : memref<160x128xf32, #tpu.memory_space<vmem>>, vector<32x64xf32>
    %c96_12 = arith.constant 96 : index
    %c0_13 = arith.constant 0 : index
    %16 = vector.load %arg3[%c96_12, %c0_13] : memref<160x1xf32, #tpu.memory_space<vmem>>, vector<32x1xf32>
    %cst_14 = arith.constant dense<0.000000e+00> : vector<32x128xf32>
    %17 = tpu.matmul %15, %14, %cst_14 {dimension_numbers = #tpu.dot_dimension_numbers<[1], [0], [0], [1], [0, 0, 1, 1], [], []>} : vector<32x64xf32>, vector<64x128xf32>, vector<32x128xf32> -> vector<32x128xf32>
    %18 = vector.broadcast %16 : vector<32x1xf32> to vector<32x128xf32>
    %19 = arith.addf %17, %18 : vector<32x128xf32>
    %cst_15 = arith.constant 0.000000e+00 : f32
    %20 = vector.broadcast %cst_15 : f32 to vector<32x128xf32>
    %21 = arith.maximumf %19, %20 : vector<32x128xf32>
    %c128 = arith.constant 128 : index
    %c0_16 = arith.constant 0 : index
    %22 = vector.load %arg2[%c128, %c0_16] : memref<160x128xf32, #tpu.memory_space<vmem>>, vector<16x32xf32>
    %c128_17 = arith.constant 128 : index
    %c0_18 = arith.constant 0 : index
    %23 = vector.load %arg3[%c128_17, %c0_18] : memref<160x1xf32, #tpu.memory_space<vmem>>, vector<16x1xf32>
    %cst_19 = arith.constant dense<0.000000e+00> : vector<16x128xf32>
    %24 = tpu.matmul %22, %21, %cst_19 {dimension_numbers = #tpu.dot_dimension_numbers<[1], [0], [0], [1], [0, 0, 1, 1], [], []>} : vector<16x32xf32>, vector<32x128xf32>, vector<16x128xf32> -> vector<16x128xf32>
    %25 = vector.broadcast %23 : vector<16x1xf32> to vector<16x128xf32>
    %26 = arith.addf %24, %25 : vector<16x128xf32>
    %cst_20 = arith.constant 0.000000e+00 : f32
    %27 = vector.broadcast %cst_20 : f32 to vector<16x128xf32>
    %28 = arith.maximumf %26, %27 : vector<16x128xf32>
    %c144 = arith.constant 144 : index
    %c0_21 = arith.constant 0 : index
    %29 = vector.load %arg2[%c144, %c0_21] : memref<160x128xf32, #tpu.memory_space<vmem>>, vector<3x16xf32>
    %c144_22 = arith.constant 144 : index
    %c0_23 = arith.constant 0 : index
    %30 = vector.load %arg3[%c144_22, %c0_23] : memref<160x1xf32, #tpu.memory_space<vmem>>, vector<3x1xf32>
    %cst_24 = arith.constant dense<0.000000e+00> : vector<3x128xf32>
    %31 = tpu.matmul %29, %28, %cst_24 {dimension_numbers = #tpu.dot_dimension_numbers<[1], [0], [0], [1], [0, 0, 1, 1], [], []>} : vector<3x16xf32>, vector<16x128xf32>, vector<3x128xf32> -> vector<3x128xf32>
    %32 = vector.broadcast %30 : vector<3x1xf32> to vector<3x128xf32>
    %33 = arith.addf %31, %32 : vector<3x128xf32>
    %c0_25 = arith.constant 0 : index
    %c0_26 = arith.constant 0 : index
    %34 = vector.load %arg4[%c0_25, %c0_26] : memref<3x128xf32, #tpu.memory_space<vmem>>, vector<3x128xf32>
    tpu.vector_store %arg4[%c0_25, %c0_26], %33 {strides = array<i32>} : memref<3x128xf32, #tpu.memory_space<vmem>>, vector<3x128xf32>,
    return
  }
  func.func @transform_0(%arg0: i32) -> (i32, i32) {
    %c0_i32 = arith.constant 0 : i32
    %c0_i32_0 = arith.constant 0 : i32
    return %c0_i32, %arg0 : i32, i32
  }
  func.func @transform_1(%arg0: i32) -> (i32, i32) {
    %c0_i32 = arith.constant 0 : i32
    %c0_i32_0 = arith.constant 0 : i32
    %c0_i32_1 = arith.constant 0 : i32
    return %c0_i32, %c0_i32_0 : i32, i32
  }
  func.func @transform_2(%arg0: i32) -> (i32, i32) {
    %c0_i32 = arith.constant 0 : i32
    %c0_i32_0 = arith.constant 0 : i32
    %c0_i32_1 = arith.constant 0 : i32
    return %c0_i32, %c0_i32_0 : i32, i32
  }
  func.func @transform_3(%arg0: i32) -> (i32, i32) {
    %c0_i32 = arith.constant 0 : i32
    %c0_i32_0 = arith.constant 0 : i32
    return %c0_i32, %arg0 : i32, i32
  }
}

</mosaic_0001>

<llo_original>
// kernel: simple_dnn_forward.1
$region0: #{simple_dnn_forward.1}
  #allocation0 [shape = 'u32[]', space=smem, size = 0x4, offset = 0x4, fixed_abs, tag = 'smem constant byte address 0x4 - core index']
  #allocation1 [shape = 'u32[72,128]{1,0:T(1,128)}', space=vmem, size = 0x9000, scoped, tag = 'internal scratch']
  %s0 = inlined_call_operand.vmem [shape: f32[6,128], index: 0, kind: input, shape index: {}]
  %s1 = inlined_call_operand.vmem [shape: f32[160,128], index: 1, kind: input, shape index: {}]
  %s2 = inlined_call_operand.vmem [shape: f32[160,1], index: 2, kind: input, shape index: {}]
  %s3 = inlined_call_operand.vmem [shape: f32[3,128], index: 3, kind: output, shape index: {}]
  %s4 = sld [smem:[#allocation0]]
  $region22: #{simple_dnn_forward.1} parent=0
    _
  %s6 = ssub.s32 1, %s4
  %s7 = scalar_select 0, %s6, %s4
  // Predicated region
  $region2: #{simple_dnn_forward.1} parent=0 // pred_check
    _
  $region3: #{simple_dnn_forward.1} parent=0 // pred_check_branch
    %9 = sbr.rel (0) target = $region5
  $region4: #{simple_dnn_forward.1} parent=0 // pred_region
    _
  $region5: #{simple_dnn_forward.1} parent=0 // pred_fallthru
    _
  // Predicated region
  $region6: #{simple_dnn_forward.1} parent=0 // pred_check
    _
  $region7: #{simple_dnn_forward.1} parent=0 // pred_check_branch
    %11 = sbr.rel (0) target = $region9
  $region8: #{simple_dnn_forward.1} parent=0 // pred_region
    _
  $region9: #{simple_dnn_forward.1} parent=0 // pred_fallthru
    _
  // Predicated region
  $region10: #{simple_dnn_forward.1} parent=0 // pred_check
    _
  $region11: #{simple_dnn_forward.1} parent=0 // pred_check_branch
    %13 = sbr.rel (0) target = $region13
  $region12: #{simple_dnn_forward.1} parent=0 // pred_region
    _
  $region13: #{simple_dnn_forward.1} parent=0 // pred_fallthru
    _
  %v14 = vld [vmem:[%s0] sm:$0x3f]
  %v15 = vld [vmem:[%s1] sm:$0xff]
  %v16 = vld [vmem:[%s1 + $0x8] sm:$0xff]
  %v17 = vld [vmem:[%s1 + $0x10] sm:$0xff]
  %v18 = vld [vmem:[%s1 + $0x18] sm:$0xff]
  %v19 = vld [vmem:[%s2] sm:$0xff]
  %v20 = vld [vmem:[%s2 + $0x8] sm:$0xff]
  %v21 = vld [vmem:[%s2 + $0x10] sm:$0xff]
  %v22 = vld [vmem:[%s2 + $0x18] sm:$0xff]
  %24 = vset.pattern.permute.xlu0 0
  %25 = vperm.xlu0 %24, %v19
  %v26 = vpop.permute.xlu0 %25
  %29 = vset.pattern.permute.xlu0 0
  %30 = vperm.xlu0 %29, %v20
  %v31 = vpop.permute.xlu0 %30
  %34 = vset.pattern.permute.xlu0 0
  %35 = vperm.xlu0 %34, %v21
  %v36 = vpop.permute.xlu0 %35
  %39 = vset.pattern.permute.xlu0 0
  %40 = vperm.xlu0 %39, %v22
  %v41 = vpop.permute.xlu0 %40
  %vm43 = vcmask 48128
  %v45 = vsel %vm43, %v15, 0
  %v48 = vsel %vm43, %v16, 0
  %v51 = vsel %vm43, %v17, 0
  %v54 = vsel %vm43, %v18, 0
  %vm56 = vcmask 1045504
  %v58 = vsel %vm56, %v14, 0
  %60 = vmatpush.msra.mxu0 0.0
  %61 = vmatpush.msra.mxu0 0.0
  %62 = vmatpush.msra.mxu0 0.0
  %63 = vmatpush.msra.mxu0 0.0
  %64 = vmatpush.msra.mxu0 0.0
  %65 = vmatpush.msra.mxu0 0.0
  %66 = vmatpush.msra.mxu0 0.0
  %67 = vmatpush.msra.mxu0 0.0
  %68 = vmatpush.msra.mxu0 0.0
  %69 = vmatpush.msra.mxu0 0.0
  %70 = vmatpush.msra.mxu0 0.0
  %71 = vmatpush.msra.mxu0 0.0
  %72 = vmatpush.msra.mxu0 0.0
  %73 = vmatpush.msra.mxu0 0.0
  %74 = vmatpush.msra.mxu0 0.0
  %75 = vmatpush.msra.mxu0 %v58
  %76 = vmatmul.f32.gmra.mxu0 %v45
  %v77 = vpop.f32.mrf.mxu0
  %v78 = vadd.f32 %v26, %v77
  %79 = vmatmul.f32.gmra.mxu0 %v48
  %v80 = vpop.f32.mrf.mxu0
  %v81 = vadd.f32 %v31, %v80
  %82 = vmatmul.f32.gmra.mxu0 %v51
  %v83 = vpop.f32.mrf.mxu0
  %v84 = vadd.f32 %v36, %v83
  %85 = vmatmul.f32.gmra.mxu0 %v54
  %v86 = vpop.f32.mrf.mxu0
  %v87 = vadd.f32 %v41, %v86
  %88 = vdwg.mxu0
  %v89 = vmax.f32 %v78, 0.0
  %v90 = vmax.f32 %v81, 0.0
  %v91 = vmax.f32 %v84, 0.0
  %v92 = vmax.f32 %v87, 0.0
  %v93 = vld [vmem:[%s1 + $0x20] sm:$0xff]
  %v94 = vld [vmem:[%s1 + $0x28] sm:$0xff]
  %v95 = vld [vmem:[%s1 + $0x30] sm:$0xff]
  %v96 = vld [vmem:[%s1 + $0x38] sm:$0xff]
  %v97 = vld [vmem:[%s1 + $0x40] sm:$0xff]
  %v98 = vld [vmem:[%s1 + $0x48] sm:$0xff]
  %v99 = vld [vmem:[%s1 + $0x50] sm:$0xff]
  %v100 = vld [vmem:[%s1 + $0x58] sm:$0xff]
  %v101 = vld [vmem:[%s2 + $0x20] sm:$0xff]
  %v102 = vld [vmem:[%s2 + $0x28] sm:$0xff]
  %v103 = vld [vmem:[%s2 + $0x30] sm:$0xff]
  %v104 = vld [vmem:[%s2 + $0x38] sm:$0xff]
  %v105 = vld [vmem:[%s2 + $0x40] sm:$0xff]
  %v106 = vld [vmem:[%s2 + $0x48] sm:$0xff]
  %v107 = vld [vmem:[%s2 + $0x50] sm:$0xff]
  %v108 = vld [vmem:[%s2 + $0x58] sm:$0xff]
  %110 = vset.pattern.permute.xlu0 0
  %111 = vperm.xlu0 %110, %v101
  %v112 = vpop.permute.xlu0 %111
  %115 = vset.pattern.permute.xlu0 0
  %116 = vperm.xlu0 %115, %v102
  %v117 = vpop.permute.xlu0 %116
  %120 = vset.pattern.permute.xlu0 0
  %121 = vperm.xlu0 %120, %v103
  %v122 = vpop.permute.xlu0 %121
  %125 = vset.pattern.permute.xlu0 0
  %126 = vperm.xlu0 %125, %v104
  %v127 = vpop.permute.xlu0 %126
  %130 = vset.pattern.permute.xlu0 0
  %131 = vperm.xlu0 %130, %v105
  %v132 = vpop.permute.xlu0 %131
  %135 = vset.pattern.permute.xlu0 0
  %136 = vperm.xlu0 %135, %v106
  %v137 = vpop.permute.xlu0 %136
  %140 = vset.pattern.permute.xlu0 0
  %141 = vperm.xlu0 %140, %v107
  %v142 = vpop.permute.xlu0 %141
  %145 = vset.pattern.permute.xlu0 0
  %146 = vperm.xlu0 %145, %v108
  %v147 = vpop.permute.xlu0 %146
  %vm149 = vcmask 261120
  %v151 = vsel %vm149, %v93, 0
  %v154 = vsel %vm149, %v94, 0
  %v157 = vsel %vm149, %v95, 0
  %v160 = vsel %vm149, %v96, 0
  %v163 = vsel %vm149, %v97, 0
  %v166 = vsel %vm149, %v98, 0
  %v169 = vsel %vm149, %v99, 0
  %v172 = vsel %vm149, %v100, 0
  %174 = vmatpush.msra.mxu0 0.0
  %175 = vmatpush.msra.mxu0 0.0
  %176 = vmatpush.msra.mxu0 0.0
  %177 = vmatpush.msra.mxu0 0.0
  %178 = vmatpush.msra.mxu0 0.0
  %179 = vmatpush.msra.mxu0 0.0
  %180 = vmatpush.msra.mxu0 0.0
  %181 = vmatpush.msra.mxu0 0.0
  %182 = vmatpush.msra.mxu0 0.0
  %183 = vmatpush.msra.mxu0 0.0
  %184 = vmatpush.msra.mxu0 0.0
  %185 = vmatpush.msra.mxu0 0.0
  %186 = vmatpush.msra.mxu0 %v92
  %187 = vmatpush.msra.mxu0 %v91
  %188 = vmatpush.msra.mxu0 %v90
  %189 = vmatpush.msra.mxu0 %v89
  %190 = vmatmul.f32.gmra.mxu0 %v151
  %v191 = vpop.f32.mrf.mxu0
  %v192 = vadd.f32 %v112, %v191
  %193 = vmatmul.f32.gmra.mxu0 %v154
  %v194 = vpop.f32.mrf.mxu0
  %v195 = vadd.f32 %v117, %v194
  %196 = vmatmul.f32.gmra.mxu0 %v157
  %v197 = vpop.f32.mrf.mxu0
  %v198 = vadd.f32 %v122, %v197
  %199 = vmatmul.f32.gmra.mxu0 %v160
  %v200 = vpop.f32.mrf.mxu0
  %v201 = vadd.f32 %v127, %v200
  %202 = vmatmul.f32.gmra.mxu0 %v163
  %v203 = vpop.f32.mrf.mxu0
  %v204 = vadd.f32 %v132, %v203
  %205 = vmatmul.f32.gmra.mxu0 %v166
  %v206 = vpop.f32.mrf.mxu0
  %v207 = vadd.f32 %v137, %v206
  %208 = vmatmul.f32.gmra.mxu0 %v169
  %v209 = vpop.f32.mrf.mxu0
  %v210 = vadd.f32 %v142, %v209
  %211 = vmatmul.f32.gmra.mxu0 %v172
  %v212 = vpop.f32.mrf.mxu0
  %v213 = vadd.f32 %v147, %v212
  %214 = vdwg.mxu0
  %v215 = vmax.f32 %v192, 0.0
  %v216 = vmax.f32 %v195, 0.0
  %v217 = vmax.f32 %v198, 0.0
  %v218 = vmax.f32 %v201, 0.0
  %v219 = vmax.f32 %v204, 0.0
  %v220 = vmax.f32 %v207, 0.0
  %v221 = vmax.f32 %v210, 0.0
  %v222 = vmax.f32 %v213, 0.0
  %v223 = vld [vmem:[%s1 + $0x60] sm:$0xff]
  %v224 = vld [vmem:[%s1 + $0x68] sm:$0xff]
  %v225 = vld [vmem:[%s1 + $0x70] sm:$0xff]
  %v226 = vld [vmem:[%s1 + $0x78] sm:$0xff]
  %v227 = vld [vmem:[%s2 + $0x60] sm:$0xff]
  %v228 = vld [vmem:[%s2 + $0x68] sm:$0xff]
  %v229 = vld [vmem:[%s2 + $0x70] sm:$0xff]
  %v230 = vld [vmem:[%s2 + $0x78] sm:$0xff]
  %232 = vset.pattern.permute.xlu0 0
  %233 = vperm.xlu0 %232, %v227
  %v234 = vpop.permute.xlu0 %233
  %237 = vset.pattern.permute.xlu0 0
  %238 = vperm.xlu0 %237, %v228
  %v239 = vpop.permute.xlu0 %238
  %242 = vset.pattern.permute.xlu0 0
  %243 = vperm.xlu0 %242, %v229
  %v244 = vpop.permute.xlu0 %243
  %247 = vset.pattern.permute.xlu0 0
  %248 = vperm.xlu0 %247, %v230
  %v249 = vpop.permute.xlu0 %248
  %vm251 = vcmask 523264
  %v253 = vsel %vm251, %v223, 0
  %v256 = vsel %vm251, %v224, 0
  %v259 = vsel %vm251, %v225, 0
  %v262 = vsel %vm251, %v226, 0
  %264 = vmatpush.msra.mxu0 0.0
  %265 = vmatpush.msra.mxu0 0.0
  %266 = vmatpush.msra.mxu0 0.0
  %267 = vmatpush.msra.mxu0 0.0
  %268 = vmatpush.msra.mxu0 0.0
  %269 = vmatpush.msra.mxu0 0.0
  %270 = vmatpush.msra.mxu0 0.0
  %271 = vmatpush.msra.mxu0 0.0
  %272 = vmatpush.msra.mxu0 %v222
  %273 = vmatpush.msra.mxu0 %v221
  %274 = vmatpush.msra.mxu0 %v220
  %275 = vmatpush.msra.mxu0 %v219
  %276 = vmatpush.msra.mxu0 %v218
  %277 = vmatpush.msra.mxu0 %v217
  %278 = vmatpush.msra.mxu0 %v216
  %279 = vmatpush.msra.mxu0 %v215
  %280 = vmatmul.f32.gmra.mxu0 %v253
  %v281 = vpop.f32.mrf.mxu0
  %v282 = vadd.f32 %v234, %v281
  %283 = vmatmul.f32.gmra.mxu0 %v256
  %v284 = vpop.f32.mrf.mxu0
  %v285 = vadd.f32 %v239, %v284
  %286 = vmatmul.f32.gmra.mxu0 %v259
  %v287 = vpop.f32.mrf.mxu0
  %v288 = vadd.f32 %v244, %v287
  %289 = vmatmul.f32.gmra.mxu0 %v262
  %v290 = vpop.f32.mrf.mxu0
  %v291 = vadd.f32 %v249, %v290
  %292 = vdwg.mxu0
  %v293 = vmax.f32 %v282, 0.0
  %v294 = vmax.f32 %v285, 0.0
  %v295 = vmax.f32 %v288, 0.0
  %v296 = vmax.f32 %v291, 0.0
  %v297 = vld [vmem:[%s1 + $0x80] sm:$0xff]
  %v298 = vld [vmem:[%s1 + $0x88] sm:$0xff]
  %v299 = vld [vmem:[%s2 + $0x80] sm:$0xff]
  %v300 = vld [vmem:[%s2 + $0x88] sm:$0xff]
  %302 = vset.pattern.permute.xlu0 0
  %303 = vperm.xlu0 %302, %v299
  %v304 = vpop.permute.xlu0 %303
  %307 = vset.pattern.permute.xlu0 0
  %308 = vperm.xlu0 %307, %v300
  %v309 = vpop.permute.xlu0 %308
  %v312 = vsel %vm149, %v297, 0
  %v315 = vsel %vm149, %v298, 0
  %317 = vmatpush.msra.mxu0 0.0
  %318 = vmatpush.msra.mxu0 0.0
  %319 = vmatpush.msra.mxu0 0.0
  %320 = vmatpush.msra.mxu0 0.0
  %321 = vmatpush.msra.mxu0 0.0
  %322 = vmatpush.msra.mxu0 0.0
  %323 = vmatpush.msra.mxu0 0.0
  %324 = vmatpush.msra.mxu0 0.0
  %325 = vmatpush.msra.mxu0 0.0
  %326 = vmatpush.msra.mxu0 0.0
  %327 = vmatpush.msra.mxu0 0.0
  %328 = vmatpush.msra.mxu0 0.0
  %329 = vmatpush.msra.mxu0 %v296
  %330 = vmatpush.msra.mxu0 %v295
  %331 = vmatpush.msra.mxu0 %v294
  %332 = vmatpush.msra.mxu0 %v293
  %333 = vmatmul.f32.gmra.mxu0 %v312
  %v334 = vpop.f32.mrf.mxu0
  %v335 = vadd.f32 %v304, %v334
  %336 = vmatmul.f32.gmra.mxu0 %v315
  %v337 = vpop.f32.mrf.mxu0
  %v338 = vadd.f32 %v309, %v337
  %339 = vdwg.mxu0
  %v340 = vmax.f32 %v335, 0.0
  %v341 = vmax.f32 %v338, 0.0
  %v342 = vld [vmem:[%s1 + $0x90] sm:$0x7]
  %v343 = vld [vmem:[%s2 + $0x90] sm:$0x7]
  %345 = vset.pattern.permute.xlu0 0
  %346 = vperm.xlu0 %345, %v343
  %v347 = vpop.permute.xlu0 %346
  %vm349 = vcmask 130048
  %v351 = vsel %vm349, %v342, 0
  %353 = vmatpush.msra.mxu0 0.0
  %354 = vmatpush.msra.mxu0 0.0
  %355 = vmatpush.msra.mxu0 0.0
  %356 = vmatpush.msra.mxu0 0.0
  %357 = vmatpush.msra.mxu0 0.0
  %358 = vmatpush.msra.mxu0 0.0
  %359 = vmatpush.msra.mxu0 0.0
  %360 = vmatpush.msra.mxu0 0.0
  %361 = vmatpush.msra.mxu0 0.0
  %362 = vmatpush.msra.mxu0 0.0
  %363 = vmatpush.msra.mxu0 0.0
  %364 = vmatpush.msra.mxu0 0.0
  %365 = vmatpush.msra.mxu0 0.0
  %366 = vmatpush.msra.mxu0 0.0
  %367 = vmatpush.msra.mxu0 %v341
  %368 = vmatpush.msra.mxu0 %v340
  %369 = vmatmul.f32.gmra.mxu0 %v351
  %v370 = vpop.f32.mrf.mxu0
  %v371 = vadd.f32 %v347, %v370
  %372 = vdwg.mxu0
  %373 = vst [vmem:[%s3] sm:$0x7] %v371
  // Predicated region
  $region14: #{simple_dnn_forward.1} parent=0 // pred_check
    _
  $region15: #{simple_dnn_forward.1} parent=0 // pred_check_branch
    %375 = sbr.rel (0) target = $region17
  $region16: #{simple_dnn_forward.1} parent=0 // pred_region
    _
  $region17: #{simple_dnn_forward.1} parent=0 // pred_fallthru
    _
  // Predicated region
  $region18: #{simple_dnn_forward.1} parent=0 // pred_check
    _
  $region19: #{simple_dnn_forward.1} parent=0 // pred_check_branch
    %377 = sbr.rel (0) target = $region21
  $region20: #{simple_dnn_forward.1} parent=0 // pred_region
    _
  $region21: #{simple_dnn_forward.1} parent=0 // pred_fallthru
    _

</llo_original>
